<compile_context>
chip_gen: v6e
topology: v6e:2x2x1
jax: 0.10.0
libtpu: 0.0.40
codegen_flags: <defaults>
</compile_context>

<pallas_src>
import jax
import jax.numpy as jnp
from jax.experimental import pallas as pl
from jax.experimental.pallas import tpu as pltpu  # noqa: F401  (kept for TPU-specific tuning)


def _supcon_head_kernel(x_ref, w1_ref, b1_ref, w2_ref, b2_ref, o_ref):
    x = x_ref[...]                                   # [Bp, K]  (K lane-dense)

    # h = relu(x @ W1^T + b1); W1 is [H, K] (PyTorch layout) -> contract dim 1 of both.
    h = jax.lax.dot_general(
        x, w1_ref[...], (((1,), (1,)), ((), ())),
        preferred_element_type=jnp.float32)          # [Bp, H]
    h = jnp.maximum(h + b1_ref[...], 0.0)

    # z = h @ W2^T + b2; W2 is [F, H] (PyTorch layout).
    z = jax.lax.dot_general(
        h.astype(w2_ref.dtype), w2_ref[...], (((1,), (1,)), ((), ())),
        preferred_element_type=jnp.float32)          # [Bp, F]
    z = z + b2_ref[...]

    # Row-wise L2 normalize == F.normalize(z, dim=1), eps=1e-12.
    sumsq = jnp.sum(z * z, axis=-1, keepdims=True)
    inv_norm = jax.lax.rsqrt(jnp.maximum(sumsq, 1e-24))   # 1 / max(||z||, 1e-12)
    o_ref[...] = (z * inv_norm).astype(o_ref.dtype)


def supcon_head_forward(features, w1, b1, w2, b2):
    """features: [B, K]; w1: [H, K]; b1: [H]; w2: [F, H]; b2: [F]  (PyTorch layouts)."""
    B, K = features.shape
    H, Kw = w1.shape
    Fd, Hw = w2.shape
    assert Kw == K and Hw == H

    # Pad batch to a multiple of 8 sublanes for full vreg occupancy / unmasked stores.
    Bp = max(8, ((B + 7) // 8) * 8)
    x = features if Bp == B else jnp.pad(features, ((0, Bp - B), (0, 0)))

    out = pl.pallas_call(
        _supcon_head_kernel,
        out_shape=jax.ShapeDtypeStruct((Bp, Fd), features.dtype),
        # No grid / BlockSpecs: single-shot, every operand fully resident in VMEM.
        # (If B is ever scaled up: tile B with a "parallel" grid axis and set
        #  vmem_limit_bytes explicitly — v7x has 64 MiB VMEM, v5e 16 MiB scoped default.)
    )(x, w1, b1.reshape(1, H), w2, b2.reshape(1, Fd))

    return out[:B]


if __name__ == "__main__":
    # Small shapes consistent with the module: encoder features [B, dim_in],
    # MLP head dim_in -> dim_in -> feat_dim, feat_dim=128 (module default).
    batch = 2
    dim_in = 256
    feat_dim = 128

    key = jax.random.PRNGKey(0)
    k_x, k_w1, k_b1, k_w2, k_b2 = jax.random.split(key, 5)

    features = jax.random.normal(k_x, (batch, dim_in), dtype=jnp.float32)

    # Deterministic nn.Linear-style init: U(-1/sqrt(fan_in), 1/sqrt(fan_in)).
    bound1 = 1.0 / (dim_in ** 0.5)
    w1 = jax.random.uniform(k_w1, (dim_in, dim_in), minval=-bound1, maxval=bound1,
                            dtype=jnp.float32)
    b1 = jax.random.uniform(k_b1, (dim_in,), minval=-bound1, maxval=bound1,
                            dtype=jnp.float32)
    bound2 = 1.0 / (dim_in ** 0.5)
    w2 = jax.random.uniform(k_w2, (feat_dim, dim_in), minval=-bound2, maxval=bound2,
                            dtype=jnp.float32)
    b2 = jax.random.uniform(k_b2, (feat_dim,), minval=-bound2, maxval=bound2,
                            dtype=jnp.float32)

    out = supcon_head_forward(features, w1, b1, w2, b2)
    out = jax.block_until_ready(out)

    # Plain-JAX reference matching the PyTorch head + F.normalize(dim=1).
    h_ref = jnp.maximum(features @ w1.T + b1, 0.0)
    z_ref = h_ref @ w2.T + b2
    norm = jnp.sqrt(jnp.sum(z_ref * z_ref, axis=-1, keepdims=True))
    ref = z_ref / jnp.maximum(norm, 1e-12)

    assert out.shape == (batch, feat_dim)
    assert jnp.allclose(out, ref, atol=1e-4, rtol=1e-4)
    # Sanity: rows are unit-norm.
    assert jnp.allclose(jnp.linalg.norm(out, axis=-1), 1.0, atol=1e-4)

    print("KERNEL_OK")
</pallas_src>

<mosaic_0001>
module attributes {stable_mosaic.version = 11 : i64} {
  func.func @_supcon_head_kernel(%arg0: memref<8x256xf32, #tpu.memory_space<vmem>>, %arg1: memref<256x256xf32, #tpu.memory_space<vmem>>, %arg2: memref<1x256xf32, #tpu.memory_space<vmem>>, %arg3: memref<128x256xf32, #tpu.memory_space<vmem>>, %arg4: memref<1x128xf32, #tpu.memory_space<vmem>>, %arg5: memref<8x128xf32, #tpu.memory_space<vmem>>) attributes {dimension_semantics = [], scalar_prefetch = 0 : i64, scratch_operands = 0 : i64, tpu.core_type = #tpu.core_type<tc>} {
    %c0 = arith.constant 0 : index
    %c0_0 = arith.constant 0 : index
    %0 = vector.load %arg0[%c0, %c0_0] : memref<8x256xf32, #tpu.memory_space<vmem>>, vector<8x256xf32>
    %c0_1 = arith.constant 0 : index
    %c0_2 = arith.constant 0 : index
    %1 = vector.load %arg1[%c0_1, %c0_2] : memref<256x256xf32, #tpu.memory_space<vmem>>, vector<256x256xf32>
    %cst = arith.constant dense<0.000000e+00> : vector<8x256xf32>
    %2 = tpu.matmul %0, %1, %cst {dimension_numbers = #tpu.dot_dimension_numbers<[1], [1], [0], [0], [0, 0, 1, 0], [], []>} : vector<8x256xf32>, vector<256x256xf32>, vector<8x256xf32> -> vector<8x256xf32>
    %c0_3 = arith.constant 0 : index
    %c0_4 = arith.constant 0 : index
    %3 = vector.load %arg2[%c0_3, %c0_4] : memref<1x256xf32, #tpu.memory_space<vmem>>, vector<1x256xf32>
    %4 = vector.broadcast %3 : vector<1x256xf32> to vector<8x256xf32>
    %5 = arith.addf %2, %4 : vector<8x256xf32>
    %cst_5 = arith.constant 0.000000e+00 : f32
    %6 = vector.broadcast %cst_5 : f32 to vector<8x256xf32>
    %7 = arith.maximumf %5, %6 : vector<8x256xf32>
    %c0_6 = arith.constant 0 : index
    %c0_7 = arith.constant 0 : index
    %8 = vector.load %arg3[%c0_6, %c0_7] : memref<128x256xf32, #tpu.memory_space<vmem>>, vector<128x256xf32>
    %cst_8 = arith.constant dense<0.000000e+00> : vector<8x128xf32>
    %9 = tpu.matmul %7, %8, %cst_8 {dimension_numbers = #tpu.dot_dimension_numbers<[1], [1], [0], [0], [0, 0, 1, 0], [], []>} : vector<8x256xf32>, vector<128x256xf32>, vector<8x128xf32> -> vector<8x128xf32>
    %c0_9 = arith.constant 0 : index
    %c0_10 = arith.constant 0 : index
    %10 = vector.load %arg4[%c0_9, %c0_10] : memref<1x128xf32, #tpu.memory_space<vmem>>, vector<1x128xf32>
    %11 = vector.broadcast %10 : vector<1x128xf32> to vector<8x128xf32>
    %12 = arith.addf %9, %11 : vector<8x128xf32>
    %13 = arith.mulf %12, %12 : vector<8x128xf32>
    %cst_11 = arith.constant dense<0.000000e+00> : vector<8xf32>
    %14 = vector.multi_reduction <add>, %13, %cst_11 [1] : vector<8x128xf32> to vector<8xf32>
    %15 = vector.shape_cast %14 : vector<8xf32> to vector<8x1xf32>
    %cst_12 = arith.constant 1.000000e-24 : f32
    %16 = vector.broadcast %cst_12 : f32 to vector<8x1xf32>
    %17 = arith.maximumf %15, %16 : vector<8x1xf32>
    %18 = math.rsqrt %17 : vector<8x1xf32>
    %19 = vector.broadcast %18 : vector<8x1xf32> to vector<8x128xf32>
    %20 = arith.mulf %12, %19 : vector<8x128xf32>
    %c0_13 = arith.constant 0 : index
    %c0_14 = arith.constant 0 : index
    %21 = vector.load %arg5[%c0_13, %c0_14] : memref<8x128xf32, #tpu.memory_space<vmem>>, vector<8x128xf32>
    tpu.vector_store %arg5[%c0_13, %c0_14], %20 {strides = array<i32>} : memref<8x128xf32, #tpu.memory_space<vmem>>, vector<8x128xf32>,
    return
  }
}

</mosaic_0001>

<llo_original>
// kernel: tpu_custom_call.1
$region0: #{tpu_custom_call.1}
  #allocation0 [shape = 'u32[]', space=smem, size = 0x4, offset = 0x4, fixed_abs, tag = 'smem constant byte address 0x4 - core index']
  #allocation1 [shape = 'u32[144,128]{1,0:T(1,128)}', space=vmem, size = 0x12000, scoped, tag = 'internal scratch']
  %s0 = inlined_call_operand.hbm [shape: f32[8,256], index: 0, kind: input, shape index: {}]
  %s1 = inlined_call_operand.hbm [shape: f32[256,256], index: 1, kind: input, shape index: {}]
  %s2 = inlined_call_operand.vmem [shape: f32[1,256], index: 2, kind: input, shape index: {}]
  %s3 = inlined_call_operand.hbm [shape: f32[128,256], index: 3, kind: input, shape index: {}]
  %s4 = inlined_call_operand.vmem [shape: f32[1,128], index: 4, kind: input, shape index: {}]
  %s5 = inlined_call_operand.hbm [shape: f32[8,128], index: 5, kind: output, shape index: {}]
  %s6 = sld [smem:[#allocation0]]
  $region42: #{tpu_custom_call.1} parent=0
    _
  %s8 = ssub.s32 1, %s6
  %s9 = scalar_select 0, %s8, %s6
  $region1: #{tpu_custom_call.1} parent=0
    #allocation2 [shape = 'u8[8192]{0}', space=vmem, size = 0x2000, scoped, tag = 'input window, operand 0, single buffered']
    #allocation3 [shape = 's32[1]{0}', space=sflag, size = 0x4, scoped, tag = 'scoped memory for tpu_custom_call.1']
    #allocation4 [shape = 's32[1]{0}', space=sflag, size = 0x4, scoped, tag = 'scoped memory for tpu_custom_call.1']
    #allocation5 [shape = 'u8[262144]{0}', space=vmem, size = 0x40000, scoped, tag = 'input window, operand 1, single buffered']
    #allocation6 [shape = 's32[1]{0}', space=sflag, size = 0x4, scoped, tag = 'scoped memory for tpu_custom_call.1']
    #allocation7 [shape = 'u8[131072]{0}', space=vmem, size = 0x20000, scoped, tag = 'input window, operand 3, single buffered']
    #allocation8 [shape = 'u8[4096]{0}', space=vmem, size = 0x1000, scoped, tag = 'output window, operand 0, single buffered']
    %10 = vsyncpa [#allocation3], 0
    %11 = vsyncpa [#allocation6], 0
    %12 = vsyncpa [#allocation4], 0
    // Predicated region
    $region2: #{tpu_custom_call.1} parent=1 // pred_check
      _
    $region3: #{tpu_custom_call.1} parent=1 // pred_check_branch
      %14 = sbr.rel (0) target = $region5
    $region4: #{tpu_custom_call.1} parent=1 // pred_region
      %s16 = ssub.s32 256, 256
      %17 = vsyncadd [#allocation3], %s16
      %s19 = sshll.u32 [#allocation2], 4
      %s20 = int_to_ptr.vmem [resolvable:$true] %s19
      %22 = dma.hbm_to_vmem [thread:$0]  %s0, 256, %s20, [#allocation3]
    $region5: #{tpu_custom_call.1} parent=1 // pred_fallthru
      _
    // Predicated region
    $region6: #{tpu_custom_call.1} parent=1 // pred_check
      _
    $region7: #{tpu_custom_call.1} parent=1 // pred_check_branch
      %24 = sbr.rel (0) target = $region9
    $region8: #{tpu_custom_call.1} parent=1 // pred_region
      %s26 = ssub.s32 8192, 8192
      %27 = vsyncadd [#allocation6], %s26
      %s28 = sshll.u32 [#allocation5], 4
      %s29 = int_to_ptr.vmem [resolvable:$true] %s28
      %34 = dma.hbm_to_vmem [thread:$0]  %s1, 8192, %s29, [#allocation6], 256, 256, 16
    $region9: #{tpu_custom_call.1} parent=1 // pred_fallthru
      _
    // Predicated region
    $region10: #{tpu_custom_call.1} parent=1 // pred_check
      _
    $region11: #{tpu_custom_call.1} parent=1 // pred_check_branch
      %36 = sbr.rel (0) target = $region13
    $region12: #{tpu_custom_call.1} parent=1 // pred_region
      _
    $region13: #{tpu_custom_call.1} parent=1 // pred_fallthru
      _
    // Predicated region
    $region14: #{tpu_custom_call.1} parent=1 // pred_check
      _
    $region15: #{tpu_custom_call.1} parent=1 // pred_check_branch
      %38 = sbr.rel (0) target = $region17
    $region16: #{tpu_custom_call.1} parent=1 // pred_region
      %s40 = ssub.s32 4096, 4096
      %41 = vsyncadd [#allocation6], %s40
      %s42 = sshll.u32 [#allocation7], 4
      %s43 = int_to_ptr.vmem [resolvable:$true] %s42
      %48 = dma.hbm_to_vmem [thread:$0]  %s3, 4096, %s43, [#allocation6], 256, 256, 16
    $region17: #{tpu_custom_call.1} parent=1 // pred_fallthru
      _
    // Predicated region
    $region18: #{tpu_custom_call.1} parent=1 // pred_check
      _
    $region19: #{tpu_custom_call.1} parent=1 // pred_check_branch
      %50 = sbr.rel (0) target = $region21
    $region20: #{tpu_custom_call.1} parent=1 // pred_region
      _
    $region21: #{tpu_custom_call.1} parent=1 // pred_fallthru
      _
    // Predicated region
    $region22: #{tpu_custom_call.1} parent=1 // pred_check
      _
    $region23: #{tpu_custom_call.1} parent=1 // pred_check_branch
      %52 = sbr.rel (0) target = $region25
    $region24: #{tpu_custom_call.1} parent=1 // pred_region
      %53 = dma.done [#allocation3], 256
    $region25: #{tpu_custom_call.1} parent=1 // pred_fallthru
      _
    // Predicated region
    $region26: #{tpu_custom_call.1} parent=1 // pred_check
      _
    $region27: #{tpu_custom_call.1} parent=1 // pred_check_branch
      %55 = sbr.rel (0) target = $region29
    $region28: #{tpu_custom_call.1} parent=1 // pred_region
      %56 = dma.done [#allocation6], 8192
    $region29: #{tpu_custom_call.1} parent=1 // pred_fallthru
      _
    // Predicated region
    $region30: #{tpu_custom_call.1} parent=1 // pred_check
      _
    $region31: #{tpu_custom_call.1} parent=1 // pred_check_branch
      %58 = sbr.rel (0) target = $region33
    $region32: #{tpu_custom_call.1} parent=1 // pred_region
      %59 = dma.done [#allocation6], 4096
    $region33: #{tpu_custom_call.1} parent=1 // pred_fallthru
      _
    %v60 = vld [vmem:[#allocation2] sm:$0xff]
    %v61 = vld [vmem:[#allocation2 + $0x8] sm:$0xff]
    %v62 = vld [vmem:[#allocation5] sm:$0xff]
    %v63 = vld [vmem:[#allocation5 + $0x8] sm:$0xff]
    %v64 = vld [vmem:[#allocation5 + $0x10] sm:$0xff]
    %v65 = vld [vmem:[#allocation5 + $0x18] sm:$0xff]
    %v66 = vld [vmem:[#allocation5 + $0x20] sm:$0xff]
    %v67 = vld [vmem:[#allocation5 + $0x28] sm:$0xff]
    %v68 = vld [vmem:[#allocation5 + $0x30] sm:$0xff]
    %v69 = vld [vmem:[#allocation5 + $0x38] sm:$0xff]
    %v70 = vld [vmem:[#allocation5 + $0x40] sm:$0xff]
    %v71 = vld [vmem:[#allocation5 + $0x48] sm:$0xff]
    %v72 = vld [vmem:[#allocation5 + $0x50] sm:$0xff]
    %v73 = vld [vmem:[#allocation5 + $0x58] sm:$0xff]
    %v74 = vld [vmem:[#allocation5 + $0x60] sm:$0xff]
    %v75 = vld [vmem:[#allocation5 + $0x68] sm:$0xff]
    %v76 = vld [vmem:[#allocation5 + $0x70] sm:$0xff]
    %v77 = vld [vmem:[#allocation5 + $0x78] sm:$0xff]
    %v78 = vld [vmem:[#allocation5 + $0x80] sm:$0xff]
    %v79 = vld [vmem:[#allocation5 + $0x88] sm:$0xff]
    %v80 = vld [vmem:[#allocation5 + $0x90] sm:$0xff]
    %v81 = vld [vmem:[#allocation5 + $0x98] sm:$0xff]
    %v82 = vld [vmem:[#allocation5 + $0xa0] sm:$0xff]
    %v83 = vld [vmem:[#allocation5 + $0xa8] sm:$0xff]
    %v84 = vld [vmem:[#allocation5 + $0xb0] sm:$0xff]
    %v85 = vld [vmem:[#allocation5 + $0xb8] sm:$0xff]
    %v86 = vld [vmem:[#allocation5 + $0xc0] sm:$0xff]
    %v87 = vld [vmem:[#allocation5 + $0xc8] sm:$0xff]
    %v88 = vld [vmem:[#allocation5 + $0xd0] sm:$0xff]
    %v89 = vld [vmem:[#allocation5 + $0xd8] sm:$0xff]
    %v90 = vld [vmem:[#allocation5 + $0xe0] sm:$0xff]
    %v91 = vld [vmem:[#allocation5 + $0xe8] sm:$0xff]
    %v92 = vld [vmem:[#allocation5 + $0xf0] sm:$0xff]
    %v93 = vld [vmem:[#allocation5 + $0xf8] sm:$0xff]
    %v94 = vld [vmem:[#allocation5 + $0x100] sm:$0xff]
    %v95 = vld [vmem:[#allocation5 + $0x108] sm:$0xff]
    %v96 = vld [vmem:[#allocation5 + $0x110] sm:$0xff]
    %v97 = vld [vmem:[#allocation5 + $0x118] sm:$0xff]
    %v98 = vld [vmem:[#allocation5 + $0x120] sm:$0xff]
    %v99 = vld [vmem:[#allocation5 + $0x128] sm:$0xff]
    %v100 = vld [vmem:[#allocation5 + $0x130] sm:$0xff]
    %v101 = vld [vmem:[#allocation5 + $0x138] sm:$0xff]
    %v102 = vld [vmem:[#allocation5 + $0x140] sm:$0xff]
    %v103 = vld [vmem:[#allocation5 + $0x148] sm:$0xff]
    %v104 = vld [vmem:[#allocation5 + $0x150] sm:$0xff]
    %v105 = vld [vmem:[#allocation5 + $0x158] sm:$0xff]
    %v106 = vld [vmem:[#allocation5 + $0x160] sm:$0xff]
    %v107 = vld [vmem:[#allocation5 + $0x168] sm:$0xff]
    %v108 = vld [vmem:[#allocation5 + $0x170] sm:$0xff]
    %v109 = vld [vmem:[#allocation5 + $0x178] sm:$0xff]
    %v110 = vld [vmem:[#allocation5 + $0x180] sm:$0xff]
    %v111 = vld [vmem:[#allocation5 + $0x188] sm:$0xff]
    %v112 = vld [vmem:[#allocation5 + $0x190] sm:$0xff]
    %v113 = vld [vmem:[#allocation5 + $0x198] sm:$0xff]
    %v114 = vld [vmem:[#allocation5 + $0x1a0] sm:$0xff]
    %v115 = vld [vmem:[#allocation5 + $0x1a8] sm:$0xff]
    %v116 = vld [vmem:[#allocation5 + $0x1b0] sm:$0xff]
    %v117 = vld [vmem:[#allocation5 + $0x1b8] sm:$0xff]
    %v118 = vld [vmem:[#allocation5 + $0x1c0] sm:$0xff]
    %v119 = vld [vmem:[#allocation5 + $0x1c8] sm:$0xff]
    %v120 = vld [vmem:[#allocation5 + $0x1d0] sm:$0xff]
    %v121 = vld [vmem:[#allocation5 + $0x1d8] sm:$0xff]
    %v122 = vld [vmem:[#allocation5 + $0x1e0] sm:$0xff]
    %v123 = vld [vmem:[#allocation5 + $0x1e8] sm:$0xff]
    %v124 = vld [vmem:[#allocation5 + $0x1f0] sm:$0xff]
    %v125 = vld [vmem:[#allocation5 + $0x1f8] sm:$0xff]
    %v126 = vld [vmem:[%s2] sm:$0x3]
    %v128 = vlaneseq
    %v129 = vshrl.u32 %v128, 7
    %v130 = vsub.s32 0, %v129
    %v131 = vrot.slane %v126, %v130
    %v132 = vlaneseq
    %v133 = vshrl.u32 %v132, 7
    %v134 = vsub.s32 1, %v133
    %v135 = vrot.slane %v126, %v134
    %138 = vmatprep.subr.mxu0 %v93
    %139 = vmatpush1.xpose.msra.mxu0 %v92
    %140 = vmatprep.subr.mxu0 %v91
    %141 = vmatpush1.xpose.msra.mxu0 %v90
    %142 = vmatprep.subr.mxu0 %v89
    %143 = vmatpush1.xpose.msra.mxu0 %v88
    %144 = vmatprep.subr.mxu0 %v87
    %145 = vmatpush1.xpose.msra.mxu0 %v86
    %146 = vmatprep.subr.mxu0 %v85
    %147 = vmatpush1.xpose.msra.mxu0 %v84
    %148 = vmatprep.subr.mxu0 %v83
    %149 = vmatpush1.xpose.msra.mxu0 %v82
    %150 = vmatprep.subr.mxu0 %v81
    %151 = vmatpush1.xpose.msra.mxu0 %v80
    %152 = vmatprep.subr.mxu0 %v79
    %153 = vmatpush1.xpose.msra.mxu0 %v78
    %154 = vmatprep.subr.mxu0 %v77
    %155 = vmatpush1.xpose.msra.mxu0 %v76
    %156 = vmatprep.subr.mxu0 %v75
    %157 = vmatpush1.xpose.msra.mxu0 %v74
    %158 = vmatprep.subr.mxu0 %v73
    %159 = vmatpush1.xpose.msra.mxu0 %v72
    %160 = vmatprep.subr.mxu0 %v71
    %161 = vmatpush1.xpose.msra.mxu0 %v70
    %162 = vmatprep.subr.mxu0 %v69
    %163 = vmatpush1.xpose.msra.mxu0 %v68
    %164 = vmatprep.subr.mxu0 %v67
    %165 = vmatpush1.xpose.msra.mxu0 %v66
    %166 = vmatprep.subr.mxu0 %v65
    %167 = vmatpush1.xpose.msra.mxu0 %v64
    %168 = vmatprep.subr.mxu0 %v63
    %169 = vmatpush1.xpose.msra.mxu0 %v62
    %170 = vmatprep.subr.mxu0 %v125
    %171 = vmatpush2.xpose.msra.mxu0 %v124
    %172 = vmatprep.subr.mxu0 %v123
    %173 = vmatpush2.xpose.msra.mxu0 %v122
    %174 = vmatprep.subr.mxu0 %v121
    %175 = vmatpush2.xpose.msra.mxu0 %v120
    %176 = vmatprep.subr.mxu0 %v119
    %177 = vmatpush2.xpose.msra.mxu0 %v118
    %178 = vmatprep.subr.mxu0 %v117
    %179 = vmatpush2.xpose.msra.mxu0 %v116
    %180 = vmatprep.subr.mxu0 %v115
    %181 = vmatpush2.xpose.msra.mxu0 %v114
    %182 = vmatprep.subr.mxu0 %v113
    %183 = vmatpush2.xpose.msra.mxu0 %v112
    %184 = vmatprep.subr.mxu0 %v111
    %185 = vmatpush2.xpose.msra.mxu0 %v110
    %186 = vmatprep.subr.mxu0 %v109
    %187 = vmatpush2.xpose.msra.mxu0 %v108
    %188 = vmatprep.subr.mxu0 %v107
    %189 = vmatpush2.xpose.msra.mxu0 %v106
    %190 = vmatprep.subr.mxu0 %v105
    %191 = vmatpush2.xpose.msra.mxu0 %v104
    %192 = vmatprep.subr.mxu0 %v103
    %193 = vmatpush2.xpose.msra.mxu0 %v102
    %194 = vmatprep.subr.mxu0 %v101
    %195 = vmatpush2.xpose.msra.mxu0 %v100
    %196 = vmatprep.subr.mxu0 %v99
    %197 = vmatpush2.xpose.msra.mxu0 %v98
    %198 = vmatprep.subr.mxu0 %v97
    %199 = vmatpush2.xpose.msra.mxu0 %v96
    %200 = vmatprep.subr.mxu0 %v95
    %201 = vmatpush2.xpose.msra.mxu0 %v94
    %202 = vmatprep.mubr.f32.mxu0 %v61
    %203 = vmatmul.mubr.f32.gmra.mxu0 %v60
    %v204 = vpop.f32.mrf.mxu0
    %v205 = vadd.f32 %v131, %v204
    %v206 = vpop.f32.mrf.mxu0
    %v207 = vadd.f32 %v135, %v206
    %208 = vdwg.mxu0
    %v209 = vmax.f32 %v205, 0.0
    %v210 = vmax.f32 %v207, 0.0
    %v211 = vld [vmem:[#allocation7] sm:$0xff]
    %v212 = vld [vmem:[#allocation7 + $0x8] sm:$0xff]
    %v213 = vld [vmem:[#allocation7 + $0x10] sm:$0xff]
    %v214 = vld [vmem:[#allocation7 + $0x18] sm:$0xff]
    %v215 = vld [vmem:[#allocation7 + $0x20] sm:$0xff]
    %v216 = vld [vmem:[#allocation7 + $0x28] sm:$0xff]
    %v217 = vld [vmem:[#allocation7 + $0x30] sm:$0xff]
    %v218 = vld [vmem:[#allocation7 + $0x38] sm:$0xff]
    %v219 = vld [vmem:[#allocation7 + $0x40] sm:$0xff]
    %v220 = vld [vmem:[#allocation7 + $0x48] sm:$0xff]
    %v221 = vld [vmem:[#allocation7 + $0x50] sm:$0xff]
    %v222 = vld [vmem:[#allocation7 + $0x58] sm:$0xff]
    %v223 = vld [vmem:[#allocation7 + $0x60] sm:$0xff]
    %v224 = vld [vmem:[#allocation7 + $0x68] sm:$0xff]
    %v225 = vld [vmem:[#allocation7 + $0x70] sm:$0xff]
    %v226 = vld [vmem:[#allocation7 + $0x78] sm:$0xff]
    %v227 = vld [vmem:[#allocation7 + $0x80] sm:$0xff]
    %v228 = vld [vmem:[#allocation7 + $0x88] sm:$0xff]
    %v229 = vld [vmem:[#allocation7 + $0x90] sm:$0xff]
    %v230 = vld [vmem:[#allocation7 + $0x98] sm:$0xff]
    %v231 = vld [vmem:[#allocation7 + $0xa0] sm:$0xff]
    %v232 = vld [vmem:[#allocation7 + $0xa8] sm:$0xff]
    %v233 = vld [vmem:[#allocation7 + $0xb0] sm:$0xff]
    %v234 = vld [vmem:[#allocation7 + $0xb8] sm:$0xff]
    %v235 = vld [vmem:[#allocation7 + $0xc0] sm:$0xff]
    %v236 = vld [vmem:[#allocation7 + $0xc8] sm:$0xff]
    %v237 = vld [vmem:[#allocation7 + $0xd0] sm:$0xff]
    %v238 = vld [vmem:[#allocation7 + $0xd8] sm:$0xff]
    %v239 = vld [vmem:[#allocation7 + $0xe0] sm:$0xff]
    %v240 = vld [vmem:[#allocation7 + $0xe8] sm:$0xff]
    %v241 = vld [vmem:[#allocation7 + $0xf0] sm:$0xff]
    %v242 = vld [vmem:[#allocation7 + $0xf8] sm:$0xff]
    %v243 = vld [vmem:[%s4] sm:$0x1]
    %v245 = vlaneseq
    %v246 = vshrl.u32 %v245, 7
    %v247 = vsub.s32 0, %v246
    %v248 = vrot.slane %v243, %v247
    %250 = vmatprep.subr.mxu0 %v242
    %251 = vmatpush1.xpose.msra.mxu0 %v241
    %252 = vmatprep.subr.mxu0 %v240
    %253 = vmatpush1.xpose.msra.mxu0 %v239
    %254 = vmatprep.subr.mxu0 %v238
    %255 = vmatpush1.xpose.msra.mxu0 %v237
    %256 = vmatprep.subr.mxu0 %v236
    %257 = vmatpush1.xpose.msra.mxu0 %v235
    %258 = vmatprep.subr.mxu0 %v234
    %259 = vmatpush1.xpose.msra.mxu0 %v233
    %260 = vmatprep.subr.mxu0 %v232
    %261 = vmatpush1.xpose.msra.mxu0 %v231
    %262 = vmatprep.subr.mxu0 %v230
    %263 = vmatpush1.xpose.msra.mxu0 %v229
    %264 = vmatprep.subr.mxu0 %v228
    %265 = vmatpush1.xpose.msra.mxu0 %v227
    %266 = vmatprep.subr.mxu0 %v226
    %267 = vmatpush1.xpose.msra.mxu0 %v225
    %268 = vmatprep.subr.mxu0 %v224
    %269 = vmatpush1.xpose.msra.mxu0 %v223
    %270 = vmatprep.subr.mxu0 %v222
    %271 = vmatpush1.xpose.msra.mxu0 %v221
    %272 = vmatprep.subr.mxu0 %v220
    %273 = vmatpush1.xpose.msra.mxu0 %v219
    %274 = vmatprep.subr.mxu0 %v218
    %275 = vmatpush1.xpose.msra.mxu0 %v217
    %276 = vmatprep.subr.mxu0 %v216
    %277 = vmatpush1.xpose.msra.mxu0 %v215
    %278 = vmatprep.subr.mxu0 %v214
    %279 = vmatpush1.xpose.msra.mxu0 %v213
    %280 = vmatprep.subr.mxu0 %v212
    %281 = vmatpush1.xpose.msra.mxu0 %v211
    %282 = vmatprep.subr.mxu0 0.0
    %283 = vmatpush2.xpose.msra.mxu0 0.0
    %284 = vmatprep.subr.mxu0 0.0
    %285 = vmatpush2.xpose.msra.mxu0 0.0
    %286 = vmatprep.subr.mxu0 0.0
    %287 = vmatpush2.xpose.msra.mxu0 0.0
    %288 = vmatprep.subr.mxu0 0.0
    %289 = vmatpush2.xpose.msra.mxu0 0.0
    %290 = vmatprep.subr.mxu0 0.0
    %291 = vmatpush2.xpose.msra.mxu0 0.0
    %292 = vmatprep.subr.mxu0 0.0
    %293 = vmatpush2.xpose.msra.mxu0 0.0
    %294 = vmatprep.subr.mxu0 0.0
    %295 = vmatpush2.xpose.msra.mxu0 0.0
    %296 = vmatprep.subr.mxu0 0.0
    %297 = vmatpush2.xpose.msra.mxu0 0.0
    %298 = vmatprep.subr.mxu0 0.0
    %299 = vmatpush2.xpose.msra.mxu0 0.0
    %300 = vmatprep.subr.mxu0 0.0
    %301 = vmatpush2.xpose.msra.mxu0 0.0
    %302 = vmatprep.subr.mxu0 0.0
    %303 = vmatpush2.xpose.msra.mxu0 0.0
    %304 = vmatprep.subr.mxu0 0.0
    %305 = vmatpush2.xpose.msra.mxu0 0.0
    %306 = vmatprep.subr.mxu0 0.0
    %307 = vmatpush2.xpose.msra.mxu0 0.0
    %308 = vmatprep.subr.mxu0 0.0
    %309 = vmatpush2.xpose.msra.mxu0 0.0
    %310 = vmatprep.subr.mxu0 0.0
    %311 = vmatpush2.xpose.msra.mxu0 0.0
    %312 = vmatprep.subr.mxu0 0.0
    %313 = vmatpush2.xpose.msra.mxu0 0.0
    %314 = vmatprep.mubr.f32.mxu0 %v210
    %315 = vmatmul.mubr.f32.gmra.mxu0 %v209
    %v316 = vpop.f32.mrf.mxu0
    %v317 = vadd.f32 %v248, %v316
    %v318 = vpop.f32.mrf.mxu0
    %319 = vdwg.mxu0
    %v320 = vmul.f32 %v317, %v317
    %321 = vadd.xlane.f32.xlu0 %v320
    %v322 = vpop.xlane.xlu0 %321
    %v323 = vmax.f32 %v322, 1e-24
    %v324 = vrsqrt.pop %v323
    %v325 = vmul.f32 %v317, %v324
    %326 = vst [vmem:[#allocation8] sm:$0xff] %v325
    // Predicated region
    $region34: #{tpu_custom_call.1} parent=1 // pred_check
      _
    $region35: #{tpu_custom_call.1} parent=1 // pred_check_branch
      %328 = sbr.rel (0) target = $region37
    $region36: #{tpu_custom_call.1} parent=1 // pred_region
      %s330 = ssub.s32 128, 128
      %331 = vsyncadd [#allocation4], %s330
      %s333 = sshll.u32 [#allocation8], 4
      %s334 = int_to_ptr.vmem [resolvable:$true] %s333
      %336 = dma.vmem_to_hbm [thread:$0]  %s334, 128, %s5, [#allocation4]
    $region37: #{tpu_custom_call.1} parent=1 // pred_fallthru
      _
    // Predicated region
    $region38: #{tpu_custom_call.1} parent=1 // pred_check
      _
    $region39: #{tpu_custom_call.1} parent=1 // pred_check_branch
      %338 = sbr.rel (0) target = $region41
    $region40: #{tpu_custom_call.1} parent=1 // pred_region
      %339 = dma.done [#allocation4], 128
    $region41: #{tpu_custom_call.1} parent=1 // pred_fallthru
      _
    %340 = vsyncpa [#allocation3], 1
    %341 = vsyncpa [#allocation6], 1
    %342 = vsyncpa [#allocation4], 1

</llo_original>
